<compile_context>
chip_gen: v7x
topology: tpu7x:2x2x1
jax: 0.10.0
libtpu: 0.0.40
codegen_flags: <defaults>
</compile_context>

<pallas_src>
import jax
import jax.numpy as jnp
from jax.experimental import pallas as pl
from jax.experimental.pallas import tpu as pltpu


def _head_kernel(x_ref, w_ref, b_ref, o_ref):
    # x_ref: (tm, E) last-token activation row tile
    # w_ref: (E, C)  transposed classifier weight (resident across the grid)
    # b_ref: (1, C)  f32 bias
    acc = jnp.dot(x_ref[...], w_ref[...], preferred_element_type=jnp.float32)
    acc = acc + b_ref[...]                       # bias add in f32
    o_ref[...] = acc.astype(o_ref.dtype)


def _round_up(v, m):
    return ((v + m - 1) // m) * m


def _vmem_capacity_bytes():
    # Generation-aware VMEM capacity; conservative (v7x = 64 MiB/TC) fallback.
    try:
        return int(pltpu.get_tpu_info().vmem_capacity_bytes)
    except Exception:
        return 64 * 1024 * 1024


def _select_row_tile(B, E, C, in_itemsize, out_itemsize):
    """Pick the activation row tile: multiple of the dtype's sublane packing,
    sized for the mem-bound sweet spot (512-1024 rows), capped by VMEM and B,
    and split so the parallel axis has >= 2 tiles when the batch allows it."""
    sublane = {4: 8, 2: 16, 1: 32}.get(in_itemsize, 8)
    lanes_e = _round_up(E, 128)
    lanes_c = _round_up(max(C, 1), 128)

    budget = max(8 * 1024 * 1024, _vmem_capacity_bytes() - 16 * 1024 * 1024)

    # Double-buffered weight + bias footprint (independent of tm).
    fixed = 2 * _round_up(E, 8) * lanes_c * in_itemsize + 2 * 8 * 128 * 4
    # Per-row cost of double-buffered activation tile + output tile.
    per_row = 2 * (lanes_e * in_itemsize + lanes_c * out_itemsize)

    # Target 512 rows; go to 1024 when the activation tile is small enough.
    target = 1024 if (2 * 1024 * lanes_e * in_itemsize) <= (8 * 1024 * 1024) else 512
    tm = min(target, _round_up(B, sublane))

    vmem_rows = max(sublane, ((budget - fixed) // max(per_row, 1)) // sublane * sublane)
    tm = max(sublane, min(tm, vmem_rows))

    # v7x has 2 TensorCores: ensure >= 2 row tiles whenever B can be split.
    if pl.cdiv(B, tm) < 2 and B > sublane:
        tm = max(sublane, _round_up(pl.cdiv(B, 2), sublane))
    return tm


def classification_head_forward(x, w, b, *, tm=None, allow_xla_fastpath=True):
    """out = x[:, -1, :] @ w.T + b   (exact ClassificationHead semantics).

    x: (B, S, E) activations, w: (C, E) torch fc.weight, b: (C,) torch fc.bias.
    Returns (B, C) in x.dtype (f32 MXU accumulation + f32 bias add).
    """
    B, S, E = x.shape
    C = w.shape[0]
    out_dtype = x.dtype
    in_itemsize = jnp.dtype(x.dtype).itemsize
    out_itemsize = jnp.dtype(out_dtype).itemsize

    # Tiny per-call weight prep (precomputable by the caller in real use).
    w_t = w.T.astype(x.dtype)                         # (E, C) — narrow, not lane-padded
    b_p = b.astype(jnp.float32).reshape(1, C)         # (1, C)

    # Tiny-shape fast path: fixed pallas_call overhead dominates below ~256 KiB.
    if allow_xla_fastpath and B * E * in_itemsize < 256 * 1024:
        acc = jnp.dot(x[:, -1, :], w_t, preferred_element_type=jnp.float32)
        return (acc + b_p).astype(out_dtype)

    if tm is None:
        tm = _select_row_tile(B, E, C, in_itemsize, out_itemsize)
    else:
        sublane = {4: 8, 2: 16, 1: 32}.get(in_itemsize, 8)
        tm = max(sublane, _round_up(min(tm, _round_up(B, sublane)), sublane))
    grid_m = pl.cdiv(B, tm)

    if E % 128 == 0:
        # In-pipeline last-token gather: view x as (B, S*E) (free trailing-dim
        # merge) and point the lane-block at column-block S-1 so only the
        # last-token rows are ever DMA'd from HBM.
        x_in = x.reshape(B, S * E)
        x_spec = pl.BlockSpec((tm, E), lambda i: (i, S - 1))
    else:
        # Fallback when E is not lane-aligned: one wrapper slice, no pad pass
        # (grid still handles the ragged final row tile).
        x_in = x[:, -1, :]
        x_spec = pl.BlockSpec((tm, E), lambda i: (i, 0))

    # VMEM limit: actual double-buffered bytes + slack, never a whole v7x core.
    lanes_e = _round_up(E, 128)
    lanes_c = _round_up(C, 128)
    need = (2 * tm * (lanes_e * in_itemsize + lanes_c * out_itemsize)
            + 2 * _round_up(E, 8) * lanes_c * in_itemsize + 2 * 8 * 128 * 4)
    budget = max(8 * 1024 * 1024, _vmem_capacity_bytes() - 16 * 1024 * 1024)
    vmem_limit = int(min(budget, max(16 * 1024 * 1024, need + 4 * 1024 * 1024)))

    out = pl.pallas_call(
        _head_kernel,
        out_shape=jax.ShapeDtypeStruct((B, C), out_dtype),
        grid_spec=pltpu.PrefetchScalarGridSpec(
            num_scalar_prefetch=0,
            grid=(grid_m,),
            in_specs=[
                x_spec,                                   # last-token row tile
                pl.BlockSpec((E, C), lambda i: (0, 0)),   # narrow weight, resident
                pl.BlockSpec((1, C), lambda i: (0, 0)),   # bias
            ],
            out_specs=pl.BlockSpec((tm, C), lambda i: (i, 0)),
        ),
        compiler_params=pltpu.CompilerParams(
            dimension_semantics=("parallel",),
            vmem_limit_bytes=vmem_limit,
        ),
    )(x_in, w_t, b_p)
    return out


if __name__ == "__main__":
    # Module defaults: embedding_size=768, num_classes=5; small batch/seq.
    batch, seq, emb, num_classes = 2, 8, 768, 5

    key = jax.random.PRNGKey(0)
    kx, kw, kb = jax.random.split(key, 3)

    # torch.nn.Linear default init: U[-1/sqrt(fan_in), 1/sqrt(fan_in)].
    lim = 1.0 / jnp.sqrt(jnp.float32(emb))
    w = jax.random.uniform(kw, (num_classes, emb), jnp.float32, -lim, lim)  # fc.weight
    b = jax.random.uniform(kb, (num_classes,), jnp.float32, -lim, lim)      # fc.bias
    x = jax.random.normal(kx, (batch, seq, emb), jnp.float32)

    fwd = jax.jit(classification_head_forward,
                  static_argnames=("tm", "allow_xla_fastpath"))
    out = fwd(x, w, b, allow_xla_fastpath=False)   # force the Pallas path
    out = jax.block_until_ready(out)

    # Reference: exact module semantics, high-precision dot.
    ref = jnp.dot(x[:, -1, :], w.T, precision=jax.lax.Precision.HIGHEST) + b
    assert out.shape == (batch, num_classes)
    assert jnp.max(jnp.abs(out.astype(jnp.float32) - ref)) < 2e-3

    print("KERNEL_OK")
</pallas_src>

<mosaic_0001>
module attributes {stable_mosaic.version = 11 : i64} {
  func.func @_head_kernel(%arg0: i32, %arg1: memref<8x768xf32, #tpu.memory_space<vmem>>, %arg2: memref<768x5xf32, #tpu.memory_space<vmem>>, %arg3: memref<1x5xf32, #tpu.memory_space<vmem>>, %arg4: memref<8x5xf32, #tpu.memory_space<vmem>>) attributes {dimension_semantics = [#tpu.dimension_semantics<parallel>], iteration_bounds = array<i64: 1>, scalar_prefetch = 0 : i64, scratch_operands = 0 : i64, tpu.core_type = #tpu.core_type<tc>, window_params = [{transform_indices = @transform_0, window_bounds = array<i64: 8, 768>}, {pipeline_mode = #tpu.pipeline_mode<synchronous>, transform_indices = @transform_1, window_bounds = array<i64: 768, 5>}, {pipeline_mode = #tpu.pipeline_mode<synchronous>, transform_indices = @transform_2, window_bounds = array<i64: 1, 5>}, {transform_indices = @transform_3, window_bounds = array<i64: 8, 5>}]} {
    %c0 = arith.constant 0 : index
    %c0_0 = arith.constant 0 : index
    %0 = vector.load %arg1[%c0, %c0_0] : memref<8x768xf32, #tpu.memory_space<vmem>>, vector<8x768xf32>
    %c0_1 = arith.constant 0 : index
    %c0_2 = arith.constant 0 : index
    %1 = vector.load %arg2[%c0_1, %c0_2] : memref<768x5xf32, #tpu.memory_space<vmem>>, vector<768x5xf32>
    %cst = arith.constant dense<0.000000e+00> : vector<8x5xf32>
    %2 = tpu.matmul %0, %1, %cst {dimension_numbers = #tpu.dot_dimension_numbers<[1], [0], [0], [1], [0, 0, 1, 1], [], []>} : vector<8x768xf32>, vector<768x5xf32>, vector<8x5xf32> -> vector<8x5xf32>
    %c0_3 = arith.constant 0 : index
    %c0_4 = arith.constant 0 : index
    %3 = vector.load %arg3[%c0_3, %c0_4] : memref<1x5xf32, #tpu.memory_space<vmem>>, vector<1x5xf32>
    %4 = vector.broadcast %3 : vector<1x5xf32> to vector<8x5xf32>
    %5 = arith.addf %2, %4 : vector<8x5xf32>
    %c0_5 = arith.constant 0 : index
    %c0_6 = arith.constant 0 : index
    %6 = vector.load %arg4[%c0_5, %c0_6] : memref<8x5xf32, #tpu.memory_space<vmem>>, vector<8x5xf32>
    tpu.vector_store %arg4[%c0_5, %c0_6], %5 {strides = array<i32>} : memref<8x5xf32, #tpu.memory_space<vmem>>, vector<8x5xf32>,
    return
  }
  func.func @transform_0(%arg0: i32) -> (i32, i32) {
    %c7_i32 = arith.constant 7 : i32
    %c0_i32 = arith.constant 0 : i32
    return %arg0, %c7_i32 : i32, i32
  }
  func.func @transform_1(%arg0: i32) -> (i32, i32) {
    %c0_i32 = arith.constant 0 : i32
    %c0_i32_0 = arith.constant 0 : i32
    %c0_i32_1 = arith.constant 0 : i32
    return %c0_i32, %c0_i32_0 : i32, i32
  }
  func.func @transform_2(%arg0: i32) -> (i32, i32) {
    %c0_i32 = arith.constant 0 : i32
    %c0_i32_0 = arith.constant 0 : i32
    %c0_i32_1 = arith.constant 0 : i32
    return %c0_i32, %c0_i32_0 : i32, i32
  }
  func.func @transform_3(%arg0: i32) -> (i32, i32) {
    %c0_i32 = arith.constant 0 : i32
    %c0_i32_0 = arith.constant 0 : i32
    return %arg0, %c0_i32 : i32, i32
  }
}

</mosaic_0001>

<llo_original>
// kernel: classification_head_forward.1
$region0: #{classification_head_forward.1}
  #allocation0 [shape = 'u32[]', space=smem, size = 0x4, offset = 0x4, fixed_abs, tag = 'smem constant byte address 0x4 - core index']
  #allocation1 [shape = 'u32[144,128]{1,0:T(1,128)}', space=vmem, size = 0x12000, scoped, tag = 'internal scratch']
  %s0 = inlined_call_operand.vmem [shape: f32[2,6144], index: 0, kind: input, shape index: {}]
  %s1 = inlined_call_operand.vmem [shape: f32[768,5], index: 1, kind: input, shape index: {}]
  %s2 = inlined_call_operand.vmem [shape: f32[1,5], index: 2, kind: input, shape index: {}]
  %s3 = inlined_call_operand.hbm [shape: f32[2,5], index: 3, kind: output, shape index: {}]
  %s4 = sld [smem:[#allocation0]]
  $region48: #{classification_head_forward.1} parent=0
    _
  %s6 = ssub.s32 1, %s4
  %s7 = scalar_select 0, %s6, %s4
  $region1: #{classification_head_forward.1} parent=0
    #allocation2 [shape = 'u8[24576]{0}', space=vmem, size = 0x6000, scoped, tag = 'input window, operand 0, single buffered']
    #allocation3 [shape = 'u8[4096]{0}', space=vmem, size = 0x1000, scoped, tag = 'output window, operand 0, single buffered']
    #allocation4 [shape = 's32[1]{0}', space=sflag, size = 0x4, scoped, tag = 'scoped memory for classification_head_forward.1']
    %8 = vsyncpa [#allocation4], 0
    // Predicated region
    $region2: #{classification_head_forward.1} parent=1 // pred_check
      _
    $region3: #{classification_head_forward.1} parent=1 // pred_check_branch
      %10 = sbr.rel (0) target = $region5
    $region4: #{classification_head_forward.1} parent=1 // pred_region
      %s11 = scalar_lea.vmem %s0, 84
      // Predicated region
      $region6: #{classification_head_forward.1} parent=4 // pred_check
        _
      $region7: #{classification_head_forward.1} parent=4 // pred_check_branch
        %13 = sbr.rel (0) target = $region9
      $region8: #{classification_head_forward.1} parent=4 // pred_region
        // Predicated region
        $region10: #{classification_head_forward.1} parent=8 // pred_check
          _
        $region11: #{classification_head_forward.1} parent=8 // pred_check_branch
          %15 = sbr.rel (0) target = $region13
        $region12: #{classification_head_forward.1} parent=8 // pred_region
          %s16 = scalar_lea.vmem %s11, 8
          %s17 = scalar_lea.vmem [#allocation2], 8
          loop: start=0, step=1, limit=1
          $region14: #{classification_head_forward.1} parent=12 // loop_pre_header
            _
          $region15: #{classification_head_forward.1} parent=12 // loop_header
            %s19 = sphi 0, %s23
            %p20 = scmp.ge.s32.totalorder %s19, 1
            %s24 = sphi %s11, %s11
            %s25 = sphi [#allocation2], [#allocation2]
          $region16: #{classification_head_forward.1} parent=12 // loop_header_branch
            %22 = sbr.rel (%p20) target = $region20
          $region17: #{classification_head_forward.1} parent=12 // loop_body
            %v26 = vld [vmem:[%s24] sm:$0xff]
            %27 = vst [vmem:[%s25] sm:$0xff] %v26
          $region18: #{classification_head_forward.1} parent=12 // loop_footer
            %s23 = sadd.s32 1, %s19
          $region19: #{classification_head_forward.1} parent=12 // loop_footer_branch
            %18 = sbr.rel target = $region15
          $region20: #{classification_head_forward.1} parent=12 // loop_exit
            _
          loop: start=0, step=1, limit=1
          $region21: #{classification_head_forward.1} parent=12 // loop_pre_header
            _
          $region22: #{classification_head_forward.1} parent=12 // loop_header
            %s30 = sphi 0, %s34
            %p31 = scmp.ge.s32.totalorder %s30, 1
            %s35 = sphi %s16, %s16
            %s36 = sphi %s17, %s17
          $region23: #{classification_head_forward.1} parent=12 // loop_header_branch
            %33 = sbr.rel (%p31) target = $region27
          $region24: #{classification_head_forward.1} parent=12 // loop_body
            %v37 = vld [vmem:[%s35] sm:$0xf]
            %38 = vst [vmem:[%s36] sm:$0xf] %v37
          $region25: #{classification_head_forward.1} parent=12 // loop_footer
            %s34 = sadd.s32 1, %s30
          $region26: #{classification_head_forward.1} parent=12 // loop_footer_branch
            %29 = sbr.rel target = $region22
          $region27: #{classification_head_forward.1} parent=12 // loop_exit
            _
        $region13: #{classification_head_forward.1} parent=8 // pred_fallthru
          _
      $region9: #{classification_head_forward.1} parent=4 // pred_fallthru
        _
      %39 = vnop
    $region5: #{classification_head_forward.1} parent=1 // pred_fallthru
      _
    // Predicated region
    $region28: #{classification_head_forward.1} parent=1 // pred_check
      _
    $region29: #{classification_head_forward.1} parent=1 // pred_check_branch
      %41 = sbr.rel (0) target = $region31
    $region30: #{classification_head_forward.1} parent=1 // pred_region
      _
    $region31: #{classification_head_forward.1} parent=1 // pred_fallthru
      _
    // Predicated region
    $region32: #{classification_head_forward.1} parent=1 // pred_check
      _
    $region33: #{classification_head_forward.1} parent=1 // pred_check_branch
      %43 = sbr.rel (0) target = $region35
    $region34: #{classification_head_forward.1} parent=1 // pred_region
      _
    $region35: #{classification_head_forward.1} parent=1 // pred_fallthru
      _
    // Predicated region
    $region36: #{classification_head_forward.1} parent=1 // pred_check
      _
    $region37: #{classification_head_forward.1} parent=1 // pred_check_branch
      %45 = sbr.rel (0) target = $region39
    $region38: #{classification_head_forward.1} parent=1 // pred_region
      _
    $region39: #{classification_head_forward.1} parent=1 // pred_fallthru
      _
    %v46 = vld [vmem:[#allocation2] sm:$0xff]
    %v47 = vld [vmem:[#allocation2 + $0x8] sm:$0xf]
    %v48 = vld [vmem:[#allocation2 + $0xc] sm:$0xff]
    %v49 = vld [vmem:[#allocation2 + $0x14] sm:$0xf]
    %v50 = vld [vmem:[#allocation2 + $0x18] sm:$0xff]
    %v51 = vld [vmem:[#allocation2 + $0x20] sm:$0xf]
    %v52 = vld [vmem:[#allocation2 + $0x24] sm:$0xff]
    %v53 = vld [vmem:[#allocation2 + $0x2c] sm:$0xf]
    %v54 = vld [vmem:[%s1] sm:$0xff]
    %v55 = vld [vmem:[%s1 + $0x8] sm:$0xff]
    %v56 = vld [vmem:[%s1 + $0x10] sm:$0xff]
    %v57 = vld [vmem:[%s1 + $0x18] sm:$0xff]
    %v58 = vld [vmem:[%s1 + $0x20] sm:$0xff]
    %v59 = vld [vmem:[%s1 + $0x28] sm:$0xff]
    %v60 = vld [vmem:[%s1 + $0x30] sm:$0xff]
    %v61 = vld [vmem:[%s1 + $0x38] sm:$0xff]
    %v62 = vld [vmem:[%s1 + $0x40] sm:$0xff]
    %v63 = vld [vmem:[%s1 + $0x48] sm:$0xff]
    %v64 = vld [vmem:[%s1 + $0x50] sm:$0xff]
    %v65 = vld [vmem:[%s1 + $0x58] sm:$0xff]
    %v66 = vld [vmem:[%s1 + $0x60] sm:$0xff]
    %v67 = vld [vmem:[%s1 + $0x68] sm:$0xff]
    %v68 = vld [vmem:[%s1 + $0x70] sm:$0xff]
    %v69 = vld [vmem:[%s1 + $0x78] sm:$0xff]
    %v70 = vld [vmem:[%s1 + $0x80] sm:$0xff]
    %v71 = vld [vmem:[%s1 + $0x88] sm:$0xff]
    %v72 = vld [vmem:[%s1 + $0x90] sm:$0xff]
    %v73 = vld [vmem:[%s1 + $0x98] sm:$0xff]
    %v74 = vld [vmem:[%s1 + $0xa0] sm:$0xff]
    %v75 = vld [vmem:[%s1 + $0xa8] sm:$0xff]
    %v76 = vld [vmem:[%s1 + $0xb0] sm:$0xff]
    %v77 = vld [vmem:[%s1 + $0xb8] sm:$0xff]
    %v78 = vld [vmem:[%s1 + $0xc0] sm:$0xff]
    %v79 = vld [vmem:[%s1 + $0xc8] sm:$0xff]
    %v80 = vld [vmem:[%s1 + $0xd0] sm:$0xff]
    %v81 = vld [vmem:[%s1 + $0xd8] sm:$0xff]
    %v82 = vld [vmem:[%s1 + $0xe0] sm:$0xff]
    %v83 = vld [vmem:[%s1 + $0xe8] sm:$0xff]
    %v84 = vld [vmem:[%s1 + $0xf0] sm:$0xff]
    %v85 = vld [vmem:[%s1 + $0xf8] sm:$0xff]
    %v86 = vld [vmem:[%s1 + $0x100] sm:$0xff]
    %v87 = vld [vmem:[%s1 + $0x108] sm:$0xff]
    %v88 = vld [vmem:[%s1 + $0x110] sm:$0xff]
    %v89 = vld [vmem:[%s1 + $0x118] sm:$0xff]
    %v90 = vld [vmem:[%s1 + $0x120] sm:$0xff]
    %v91 = vld [vmem:[%s1 + $0x128] sm:$0xff]
    %v92 = vld [vmem:[%s1 + $0x130] sm:$0xff]
    %v93 = vld [vmem:[%s1 + $0x138] sm:$0xff]
    %v94 = vld [vmem:[%s1 + $0x140] sm:$0xff]
    %v95 = vld [vmem:[%s1 + $0x148] sm:$0xff]
    %v96 = vld [vmem:[%s1 + $0x150] sm:$0xff]
    %v97 = vld [vmem:[%s1 + $0x158] sm:$0xff]
    %v98 = vld [vmem:[%s1 + $0x160] sm:$0xff]
    %v99 = vld [vmem:[%s1 + $0x168] sm:$0xff]
    %v100 = vld [vmem:[%s1 + $0x170] sm:$0xff]
    %v101 = vld [vmem:[%s1 + $0x178] sm:$0xff]
    %v102 = vld [vmem:[%s1 + $0x180] sm:$0xff]
    %v103 = vld [vmem:[%s1 + $0x188] sm:$0xff]
    %v104 = vld [vmem:[%s1 + $0x190] sm:$0xff]
    %v105 = vld [vmem:[%s1 + $0x198] sm:$0xff]
    %v106 = vld [vmem:[%s1 + $0x1a0] sm:$0xff]
    %v107 = vld [vmem:[%s1 + $0x1a8] sm:$0xff]
    %v108 = vld [vmem:[%s1 + $0x1b0] sm:$0xff]
    %v109 = vld [vmem:[%s1 + $0x1b8] sm:$0xff]
    %v110 = vld [vmem:[%s1 + $0x1c0] sm:$0xff]
    %v111 = vld [vmem:[%s1 + $0x1c8] sm:$0xff]
    %v112 = vld [vmem:[%s1 + $0x1d0] sm:$0xff]
    %v113 = vld [vmem:[%s1 + $0x1d8] sm:$0xff]
    %v114 = vld [vmem:[%s1 + $0x1e0] sm:$0xff]
    %v115 = vld [vmem:[%s1 + $0x1e8] sm:$0xff]
    %v116 = vld [vmem:[%s1 + $0x1f0] sm:$0xff]
    %v117 = vld [vmem:[%s1 + $0x1f8] sm:$0xff]
    %v118 = vld [vmem:[%s1 + $0x200] sm:$0xff]
    %v119 = vld [vmem:[%s1 + $0x208] sm:$0xff]
    %v120 = vld [vmem:[%s1 + $0x210] sm:$0xff]
    %v121 = vld [vmem:[%s1 + $0x218] sm:$0xff]
    %v122 = vld [vmem:[%s1 + $0x220] sm:$0xff]
    %v123 = vld [vmem:[%s1 + $0x228] sm:$0xff]
    %v124 = vld [vmem:[%s1 + $0x230] sm:$0xff]
    %v125 = vld [vmem:[%s1 + $0x238] sm:$0xff]
    %v126 = vld [vmem:[%s1 + $0x240] sm:$0xff]
    %v127 = vld [vmem:[%s1 + $0x248] sm:$0xff]
    %v128 = vld [vmem:[%s1 + $0x250] sm:$0xff]
    %v129 = vld [vmem:[%s1 + $0x258] sm:$0xff]
    %v130 = vld [vmem:[%s1 + $0x260] sm:$0xff]
    %v131 = vld [vmem:[%s1 + $0x268] sm:$0xff]
    %v132 = vld [vmem:[%s1 + $0x270] sm:$0xff]
    %v133 = vld [vmem:[%s1 + $0x278] sm:$0xff]
    %v134 = vld [vmem:[%s1 + $0x280] sm:$0xff]
    %v135 = vld [vmem:[%s1 + $0x288] sm:$0xff]
    %v136 = vld [vmem:[%s1 + $0x290] sm:$0xff]
    %v137 = vld [vmem:[%s1 + $0x298] sm:$0xff]
    %v138 = vld [vmem:[%s1 + $0x2a0] sm:$0xff]
    %v139 = vld [vmem:[%s1 + $0x2a8] sm:$0xff]
    %v140 = vld [vmem:[%s1 + $0x2b0] sm:$0xff]
    %v141 = vld [vmem:[%s1 + $0x2b8] sm:$0xff]
    %v142 = vld [vmem:[%s1 + $0x2c0] sm:$0xff]
    %v143 = vld [vmem:[%s1 + $0x2c8] sm:$0xff]
    %v144 = vld [vmem:[%s1 + $0x2d0] sm:$0xff]
    %v145 = vld [vmem:[%s1 + $0x2d8] sm:$0xff]
    %v146 = vld [vmem:[%s1 + $0x2e0] sm:$0xff]
    %v147 = vld [vmem:[%s1 + $0x2e8] sm:$0xff]
    %v148 = vld [vmem:[%s1 + $0x2f0] sm:$0xff]
    %v149 = vld [vmem:[%s1 + $0x2f8] sm:$0xff]
    %v150 = vld [vmem:[%s2] sm:$0x1]
    %v152 = vlaneseq
    %v153 = vshrl.u32 %v152, 7
    %v154 = vsub.s32 0, %v153
    %v155 = vrot.slane %v150, %v154
    %v165 = vcombine.low %v46, %v48
    %v166 = vcombine.high %v46, %v48
    %v167 = vcombine.low %v50, %v52
    %v168 = vcombine.high %v50, %v52
    %v170 = vunpack.c.l.s4 1983009808
    %v171 = vunpack.c.0.s8 %v170
    %v172 = vlaneseq
    %v173 = vshrl.u32 %v172, 7
    %v174 = vsub.s32 %v171, %v173
    %v175 = vrot.slane %v165, %v174
    %v177 = vunpack.c.l.s4 1983009808
    %v178 = vunpack.c.0.s8 %v177
    %v179 = vlaneseq
    %v180 = vshrl.u32 %v179, 7
    %v181 = vsub.s32 %v178, %v180
    %v182 = vrot.slane %v166, %v181
    %v184 = vunpack.c.l.s4 1983009808
    %v185 = vunpack.c.0.s8 %v184
    %v186 = vlaneseq
    %v187 = vshrl.u32 %v186, 7
    %v188 = vsub.s32 %v185, %v187
    %v189 = vrot.slane %v167, %v188
    %v191 = vunpack.c.l.s4 1983009808
    %v192 = vunpack.c.0.s8 %v191
    %v193 = vlaneseq
    %v194 = vshrl.u32 %v193, 7
    %v195 = vsub.s32 %v192, %v194
    %v196 = vrot.slane %v168, %v195
    %v197 = vcombine.low %v175, %v189
    %v198 = vcombine.high %v175, %v189
    %v199 = vcombine.low %v182, %v196
    %v200 = vcombine.high %v182, %v196
    %v201 = vcombine.low %v47, %v49
    %v202 = vcombine.low %v51, %v53
    %v204 = vunpack.c.l.s4 1983009808
    %v205 = vunpack.c.0.s8 %v204
    %v206 = vlaneseq
    %v207 = vshrl.u32 %v206, 7
    %v208 = vsub.s32 %v205, %v207
    %v209 = vrot.slane %v201, %v208
    %v211 = vunpack.c.l.s4 1983009808
    %v212 = vunpack.c.0.s8 %v211
    %v213 = vlaneseq
    %v214 = vshrl.u32 %v213, 7
    %v215 = vsub.s32 %v212, %v214
    %v216 = vrot.slane %v202, %v215
    %v217 = vcombine.low %v209, %v216
    %v218 = vcombine.high %v209, %v216
    %225 = vmatprep.subr.mxu0 0.0
    %226 = vmatpush1.msra.mxu0 %v54
    %227 = vmatprep.subr.mxu0 0.0
    %228 = vmatpush1.msra.mxu0 %v55
    %229 = vmatprep.subr.mxu0 0.0
    %230 = vmatpush1.msra.mxu0 %v56
    %231 = vmatprep.subr.mxu0 0.0
    %232 = vmatpush1.msra.mxu0 %v57
    %233 = vmatprep.subr.mxu0 0.0
    %234 = vmatpush1.msra.mxu0 %v58
    %235 = vmatprep.subr.mxu0 0.0
    %236 = vmatpush1.msra.mxu0 %v59
    %237 = vmatprep.subr.mxu0 0.0
    %238 = vmatpush1.msra.mxu0 %v60
    %239 = vmatprep.subr.mxu0 0.0
    %240 = vmatpush1.msra.mxu0 %v61
    %241 = vmatprep.subr.mxu0 0.0
    %242 = vmatpush1.msra.mxu0 %v62
    %243 = vmatprep.subr.mxu0 0.0
    %244 = vmatpush1.msra.mxu0 %v63
    %245 = vmatprep.subr.mxu0 0.0
    %246 = vmatpush1.msra.mxu0 %v64
    %247 = vmatprep.subr.mxu0 0.0
    %248 = vmatpush1.msra.mxu0 %v65
    %249 = vmatprep.subr.mxu0 0.0
    %250 = vmatpush1.msra.mxu0 %v66
    %251 = vmatprep.subr.mxu0 0.0
    %252 = vmatpush1.msra.mxu0 %v67
    %253 = vmatprep.subr.mxu0 0.0
    %254 = vmatpush1.msra.mxu0 %v68
    %255 = vmatprep.subr.mxu0 0.0
    %256 = vmatpush1.msra.mxu0 %v69
    %257 = vmatprep.subr.mxu0 0.0
    %258 = vmatpush1.msra.mxu0 %v70
    %259 = vmatprep.subr.mxu0 0.0
    %260 = vmatpush1.msra.mxu0 %v71
    %261 = vmatprep.subr.mxu0 0.0
    %262 = vmatpush1.msra.mxu0 %v72
    %263 = vmatprep.subr.mxu0 0.0
    %264 = vmatpush1.msra.mxu0 %v73
    %265 = vmatprep.subr.mxu0 0.0
    %266 = vmatpush1.msra.mxu0 %v74
    %267 = vmatprep.subr.mxu0 0.0
    %268 = vmatpush1.msra.mxu0 %v75
    %269 = vmatprep.subr.mxu0 0.0
    %270 = vmatpush1.msra.mxu0 %v76
    %271 = vmatprep.subr.mxu0 0.0
    %272 = vmatpush1.msra.mxu0 %v77
    %273 = vmatprep.subr.mxu0 0.0
    %274 = vmatpush1.msra.mxu0 %v78
    %275 = vmatprep.subr.mxu0 0.0
    %276 = vmatpush1.msra.mxu0 %v79
    %277 = vmatprep.subr.mxu0 0.0
    %278 = vmatpush1.msra.mxu0 %v80
    %279 = vmatprep.subr.mxu0 0.0
    %280 = vmatpush1.msra.mxu0 %v81
    %281 = vmatprep.subr.mxu0 0.0
    %282 = vmatpush1.msra.mxu0 %v82
    %283 = vmatprep.subr.mxu0 0.0
    %284 = vmatpush1.msra.mxu0 %v83
    %285 = vmatprep.subr.mxu0 0.0
    %286 = vmatpush1.msra.mxu0 %v84
    %287 = vmatprep.subr.mxu0 0.0
    %288 = vmatpush1.msra.mxu0 %v85
    %289 = vmatprep.mubr.f32.mxu0 %v198
    %290 = vmatmul.mubr.f32.gmra.mrb[0].mxu0 %v197
    %v291 = vpop.f32.mrb[0].mxu0
    %v292 = vadd.f32 %v155, %v291
    %v293 = vpop.f32.mrb[0].mxu0
    %294 = vdwg.mxu0
    %295 = vmatprep.subr.mxu0 0.0
    %296 = vmatpush1.msra.mxu0 %v86
    %297 = vmatprep.subr.mxu0 0.0
    %298 = vmatpush1.msra.mxu0 %v87
    %299 = vmatprep.subr.mxu0 0.0
    %300 = vmatpush1.msra.mxu0 %v88
    %301 = vmatprep.subr.mxu0 0.0
    %302 = vmatpush1.msra.mxu0 %v89
    %303 = vmatprep.subr.mxu0 0.0
    %304 = vmatpush1.msra.mxu0 %v90
    %305 = vmatprep.subr.mxu0 0.0
    %306 = vmatpush1.msra.mxu0 %v91
    %307 = vmatprep.subr.mxu0 0.0
    %308 = vmatpush1.msra.mxu0 %v92
    %309 = vmatprep.subr.mxu0 0.0
    %310 = vmatpush1.msra.mxu0 %v93
    %311 = vmatprep.subr.mxu0 0.0
    %312 = vmatpush1.msra.mxu0 %v94
    %313 = vmatprep.subr.mxu0 0.0
    %314 = vmatpush1.msra.mxu0 %v95
    %315 = vmatprep.subr.mxu0 0.0
    %316 = vmatpush1.msra.mxu0 %v96
    %317 = vmatprep.subr.mxu0 0.0
    %318 = vmatpush1.msra.mxu0 %v97
    %319 = vmatprep.subr.mxu0 0.0
    %320 = vmatpush1.msra.mxu0 %v98
    %321 = vmatprep.subr.mxu0 0.0
    %322 = vmatpush1.msra.mxu0 %v99
    %323 = vmatprep.subr.mxu0 0.0
    %324 = vmatpush1.msra.mxu0 %v100
    %325 = vmatprep.subr.mxu0 0.0
    %326 = vmatpush1.msra.mxu0 %v101
    %327 = vmatprep.subr.mxu0 0.0
    %328 = vmatpush1.msra.mxu0 %v102
    %329 = vmatprep.subr.mxu0 0.0
    %330 = vmatpush1.msra.mxu0 %v103
    %331 = vmatprep.subr.mxu0 0.0
    %332 = vmatpush1.msra.mxu0 %v104
    %333 = vmatprep.subr.mxu0 0.0
    %334 = vmatpush1.msra.mxu0 %v105
    %335 = vmatprep.subr.mxu0 0.0
    %336 = vmatpush1.msra.mxu0 %v106
    %337 = vmatprep.subr.mxu0 0.0
    %338 = vmatpush1.msra.mxu0 %v107
    %339 = vmatprep.subr.mxu0 0.0
    %340 = vmatpush1.msra.mxu0 %v108
    %341 = vmatprep.subr.mxu0 0.0
    %342 = vmatpush1.msra.mxu0 %v109
    %343 = vmatprep.subr.mxu0 0.0
    %344 = vmatpush1.msra.mxu0 %v110
    %345 = vmatprep.subr.mxu0 0.0
    %346 = vmatpush1.msra.mxu0 %v111
    %347 = vmatprep.subr.mxu0 0.0
    %348 = vmatpush1.msra.mxu0 %v112
    %349 = vmatprep.subr.mxu0 0.0
    %350 = vmatpush1.msra.mxu0 %v113
    %351 = vmatprep.subr.mxu0 0.0
    %352 = vmatpush1.msra.mxu0 %v114
    %353 = vmatprep.subr.mxu0 0.0
    %354 = vmatpush1.msra.mxu0 %v115
    %355 = vmatprep.subr.mxu0 0.0
    %356 = vmatpush1.msra.mxu0 %v116
    %357 = vmatprep.subr.mxu0 0.0
    %358 = vmatpush1.msra.mxu0 %v117
    %359 = vmatprep.mubr.f32.mxu0 %v200
    %360 = vmatmul.mubr.f32.gmra.mrb[0].mxu0 %v199
    %v361 = vpop.f32.mrb[0].mxu0
    %v362 = vadd.f32 %v292, %v361
    %v363 = vpop.f32.mrb[0].mxu0
    %364 = vdwg.mxu0
    %365 = vmatprep.subr.mxu0 0.0
    %366 = vmatpush1.msra.mxu0 %v118
    %367 = vmatprep.subr.mxu0 0.0
    %368 = vmatpush1.msra.mxu0 %v119
    %369 = vmatprep.subr.mxu0 0.0
    %370 = vmatpush1.msra.mxu0 %v120
    %371 = vmatprep.subr.mxu0 0.0
    %372 = vmatpush1.msra.mxu0 %v121
    %373 = vmatprep.subr.mxu0 0.0
    %374 = vmatpush1.msra.mxu0 %v122
    %375 = vmatprep.subr.mxu0 0.0
    %376 = vmatpush1.msra.mxu0 %v123
    %377 = vmatprep.subr.mxu0 0.0
    %378 = vmatpush1.msra.mxu0 %v124
    %379 = vmatprep.subr.mxu0 0.0
    %380 = vmatpush1.msra.mxu0 %v125
    %381 = vmatprep.subr.mxu0 0.0
    %382 = vmatpush1.msra.mxu0 %v126
    %383 = vmatprep.subr.mxu0 0.0
    %384 = vmatpush1.msra.mxu0 %v127
    %385 = vmatprep.subr.mxu0 0.0
    %386 = vmatpush1.msra.mxu0 %v128
    %387 = vmatprep.subr.mxu0 0.0
    %388 = vmatpush1.msra.mxu0 %v129
    %389 = vmatprep.subr.mxu0 0.0
    %390 = vmatpush1.msra.mxu0 %v130
    %391 = vmatprep.subr.mxu0 0.0
    %392 = vmatpush1.msra.mxu0 %v131
    %393 = vmatprep.subr.mxu0 0.0
    %394 = vmatpush1.msra.mxu0 %v132
    %395 = vmatprep.subr.mxu0 0.0
    %396 = vmatpush1.msra.mxu0 %v133
    %397 = vmatprep.subr.mxu0 0.0
    %398 = vmatpush1.msra.mxu0 %v134
    %399 = vmatprep.subr.mxu0 0.0
    %400 = vmatpush1.msra.mxu0 %v135
    %401 = vmatprep.subr.mxu0 0.0
    %402 = vmatpush1.msra.mxu0 %v136
    %403 = vmatprep.subr.mxu0 0.0
    %404 = vmatpush1.msra.mxu0 %v137
    %405 = vmatprep.subr.mxu0 0.0
    %406 = vmatpush1.msra.mxu0 %v138
    %407 = vmatprep.subr.mxu0 0.0
    %408 = vmatpush1.msra.mxu0 %v139
    %409 = vmatprep.subr.mxu0 0.0
    %410 = vmatpush1.msra.mxu0 %v140
    %411 = vmatprep.subr.mxu0 0.0
    %412 = vmatpush1.msra.mxu0 %v141
    %413 = vmatprep.subr.mxu0 0.0
    %414 = vmatpush1.msra.mxu0 %v142
    %415 = vmatprep.subr.mxu0 0.0
    %416 = vmatpush1.msra.mxu0 %v143
    %417 = vmatprep.subr.mxu0 0.0
    %418 = vmatpush1.msra.mxu0 %v144
    %419 = vmatprep.subr.mxu0 0.0
    %420 = vmatpush1.msra.mxu0 %v145
    %421 = vmatprep.subr.mxu0 0.0
    %422 = vmatpush1.msra.mxu0 %v146
    %423 = vmatprep.subr.mxu0 0.0
    %424 = vmatpush1.msra.mxu0 %v147
    %425 = vmatprep.subr.mxu0 0.0
    %426 = vmatpush1.msra.mxu0 %v148
    %427 = vmatprep.subr.mxu0 0.0
    %428 = vmatpush1.msra.mxu0 %v149
    %429 = vmatprep.mubr.f32.mxu0 %v218
    %430 = vmatmul.mubr.f32.gmra.mrb[0].mxu0 %v217
    %v431 = vpop.f32.mrb[0].mxu0
    %v432 = vadd.f32 %v362, %v431
    %v433 = vpop.f32.mrb[0].mxu0
    %434 = vdwg.mxu0
    %vm435 = vcmask 39936
    %436 = vst.msk [vmem:[#allocation3] sm:$0xff] %vm435, %v432
    // Predicated region
    $region40: #{classification_head_forward.1} parent=1 // pred_check
      _
    $region41: #{classification_head_forward.1} parent=1 // pred_check_branch
      %438 = sbr.rel (0) target = $region43
    $region42: #{classification_head_forward.1} parent=1 // pred_region
      %s440 = ssub.s32 128, 32
      %441 = vsyncadd [#allocation4], %s440
      %s442 = sshll.u32 [#allocation3], 4
      %s443 = int_to_ptr.vmem [resolvable:$true] %s442
      %448 = dma.vmem_to_hbm [thread:$0]  %s443, 32, %s3, [#allocation4], 32, 32, 2
    $region43: #{classification_head_forward.1} parent=1 // pred_fallthru
      _
    // Predicated region
    $region44: #{classification_head_forward.1} parent=1 // pred_check
      _
    $region45: #{classification_head_forward.1} parent=1 // pred_check_branch
      %450 = sbr.rel (0) target = $region47
    $region46: #{classification_head_forward.1} parent=1 // pred_region
      %451 = dma.done [#allocation4], 128
    $region47: #{classification_head_forward.1} parent=1 // pred_fallthru
      _
    %452 = vsyncpa [#allocation4], 1

</llo_original>
